<compile_context>
chip_gen: v7x
topology: tpu7x:2x2x1
jax: 0.10.0
libtpu: 0.0.40
codegen_flags: <defaults>
</compile_context>

<pallas_src>
import jax
import jax.numpy as jnp
from jax.experimental import pallas as pl
from jax.experimental.pallas import tpu as pltpu


def mlp_kernel(x_ref, w1_ref, b1_ref, w2_ref, b2_ref, w3_ref, b3_ref, o_ref):
    """One batch tile, transposed layout: activations are (H, TB)."""
    x = x_ref[...].astype(jnp.float32)                        # (1, TB)

    # ---- fc1 + ReLU: K=1 contraction -> VPU broadcast outer product. ----
    w1 = w1_ref[...].astype(jnp.float32)                      # (H, 1)
    b1 = b1_ref[...].astype(jnp.float32)                      # (H, 1)
    h = jnp.maximum(w1 * x + b1, 0.0)                         # (H, TB)

    # ---- fc2 + ReLU: dense (H,H) @ (H,TB) on the MXU, f32 accumulate. ----
    w2 = w2_ref[...]
    h = jnp.dot(w2, h.astype(w2.dtype),
                preferred_element_type=jnp.float32)           # (H, TB)
    h = jnp.maximum(h + b2_ref[...].astype(jnp.float32), 0.0)

    # ---- fc3: N=1 output -> VPU multiply + sublane (XLU) reduction. ----
    w3 = w3_ref[...].astype(jnp.float32)                      # (H, 1)
    y = jnp.sum(h * w3, axis=0, keepdims=True)                # (1, TB)
    y = y + b3_ref[...].astype(jnp.float32)

    o_ref[...] = y.astype(o_ref.dtype)                        # lane-dense store


def net_forward(x, params, *, tile_b=None):
    """x: (B, 1). params: dict w1,b1,w2,b2,w3,b3 (layout documented above)."""
    B, in_dim = x.shape
    assert in_dim == 1, "Net.fc1 expects a single input feature"
    H = params["w1"].shape[0]

    # Largest lane tile that covers the batch in few grid steps: whole batch in
    # one step when small, otherwise 128-lane-aligned tiles.
    if tile_b is None:
        tile_b = B if B <= 1024 else 1024
    if tile_b != B:
        assert tile_b % 128 == 0 and B % tile_b == 0, (
            "tile_b must equal B or be a multiple of 128 dividing B")

    x_t = x.reshape(1, B)            # batch onto the 128-lane axis (lane-dense)
    grid = (B // tile_b,)

    # Weights/biases are small and constant across the grid: full-array blocks.
    # TODO(synk): once H grows, single-buffer these constant blocks
    # (pipeline_mode=pl.Buffered(1)) / raise vmem_limit_bytes for v7x's 64 MiB.
    full = lambda shape: pl.BlockSpec(shape, lambda i: (0, 0))

    out_t = pl.pallas_call(
        mlp_kernel,
        out_shape=jax.ShapeDtypeStruct((1, B), jnp.float32),
        grid_spec=pltpu.PrefetchScalarGridSpec(
            num_scalar_prefetch=0,
            grid=grid,
            in_specs=[
                pl.BlockSpec((1, tile_b), lambda i: (0, i)),   # x tile (lane-dense)
                full((H, 1)),                                  # w1
                full((H, 1)),                                  # b1
                full((H, H)),                                  # w2
                full((H, 1)),                                  # b2
                full((H, 1)),                                  # w3
                full((1, 1)),                                  # b3
            ],
            out_specs=pl.BlockSpec((1, tile_b), lambda i: (0, i)),
        ),
        compiler_params=pltpu.CompilerParams(
            dimension_semantics=("parallel",),   # megacore sharding on v7x
        ),
    )(x_t, params["w1"], params["b1"], params["w2"], params["b2"],
      params["w3"], params["b3"])

    return out_t.reshape(B, 1)


def init_params(key, n_hidden, dtype=jnp.float32):
    """PyTorch nn.Linear default init: U(-1/sqrt(fan_in), +1/sqrt(fan_in))."""
    ks = jax.random.split(key, 6)
    H = n_hidden

    def unif(k, shape, fan_in):
        bound = 1.0 / (float(fan_in) ** 0.5)
        return jax.random.uniform(k, shape, jnp.float32, -bound, bound).astype(dtype)

    return {
        "w1": unif(ks[0], (H, 1), 1),     # fc1.weight
        "b1": unif(ks[1], (H, 1), 1),     # fc1.bias (as a column)
        "w2": unif(ks[2], (H, H), H),     # fc2.weight (out, in)
        "b2": unif(ks[3], (H, 1), H),     # fc2.bias (as a column)
        "w3": unif(ks[4], (H, 1), H),     # fc3.weight.T
        "b3": unif(ks[5], (1, 1), H),     # fc3.bias
    }


def reference_forward(x, p):
    """Pure-JAX reference matching torch Net.forward (x: (B, 1))."""
    p = jax.tree_util.tree_map(lambda a: a.astype(jnp.float32), p)
    h = jnp.maximum(x @ p["w1"].T + p["b1"].T, 0.0)
    h = jnp.maximum(h @ p["w2"].T + p["b2"].T, 0.0)
    return h @ p["w3"] + p["b3"].T


if __name__ == "__main__":
    key = jax.random.PRNGKey(0)
    kp, kx = jax.random.split(key)

    n_hidden = 128   # lane-aligned hidden size (multiple of 128)
    batch = 512      # large enough to amortize per-grid-step overhead

    params = init_params(kp, n_hidden)
    x = jax.random.normal(kx, (batch, 1), dtype=jnp.float32)

    out = net_forward(x, params, tile_b=256)   # grid=(2,): both v7x TCs busy
    out = jax.block_until_ready(out)

    ref = reference_forward(x, params)
    assert out.shape == (batch, 1)
    assert jnp.allclose(out, ref, atol=1e-4, rtol=1e-4), "mismatch vs JAX reference"

    print("KERNEL_OK")
</pallas_src>

<mosaic_0001>
module attributes {stable_mosaic.version = 11 : i64} {
  func.func @mlp_kernel(%arg0: i32, %arg1: memref<1x256xf32, #tpu.memory_space<vmem>>, %arg2: memref<128x1xf32, #tpu.memory_space<vmem>>, %arg3: memref<128x1xf32, #tpu.memory_space<vmem>>, %arg4: memref<128x128xf32, #tpu.memory_space<vmem>>, %arg5: memref<128x1xf32, #tpu.memory_space<vmem>>, %arg6: memref<128x1xf32, #tpu.memory_space<vmem>>, %arg7: memref<1x1xf32, #tpu.memory_space<vmem>>, %arg8: memref<1x256xf32, #tpu.memory_space<vmem>>) attributes {dimension_semantics = [#tpu.dimension_semantics<parallel>], iteration_bounds = array<i64: 2>, scalar_prefetch = 0 : i64, scratch_operands = 0 : i64, tpu.core_type = #tpu.core_type<tc>, window_params = [{transform_indices = @transform_0, window_bounds = array<i64: 1, 256>}, {pipeline_mode = #tpu.pipeline_mode<synchronous>, transform_indices = @transform_1, window_bounds = array<i64: 128, 1>}, {pipeline_mode = #tpu.pipeline_mode<synchronous>, transform_indices = @transform_2, window_bounds = array<i64: 128, 1>}, {pipeline_mode = #tpu.pipeline_mode<synchronous>, transform_indices = @transform_3, window_bounds = array<i64: 128, 128>}, {pipeline_mode = #tpu.pipeline_mode<synchronous>, transform_indices = @transform_4, window_bounds = array<i64: 128, 1>}, {pipeline_mode = #tpu.pipeline_mode<synchronous>, transform_indices = @transform_5, window_bounds = array<i64: 128, 1>}, {pipeline_mode = #tpu.pipeline_mode<synchronous>, transform_indices = @transform_6, window_bounds = array<i64: 1, 1>}, {transform_indices = @transform_7, window_bounds = array<i64: 1, 256>}]} {
    %c0 = arith.constant 0 : index
    %c0_0 = arith.constant 0 : index
    %0 = vector.load %arg1[%c0, %c0_0] : memref<1x256xf32, #tpu.memory_space<vmem>>, vector<1x256xf32>
    %c0_1 = arith.constant 0 : index
    %c0_2 = arith.constant 0 : index
    %1 = vector.load %arg2[%c0_1, %c0_2] : memref<128x1xf32, #tpu.memory_space<vmem>>, vector<128x1xf32>
    %c0_3 = arith.constant 0 : index
    %c0_4 = arith.constant 0 : index
    %2 = vector.load %arg3[%c0_3, %c0_4] : memref<128x1xf32, #tpu.memory_space<vmem>>, vector<128x1xf32>
    %3 = vector.broadcast %1 : vector<128x1xf32> to vector<128x256xf32>
    %4 = vector.broadcast %0 : vector<1x256xf32> to vector<128x256xf32>
    %5 = arith.mulf %3, %4 : vector<128x256xf32>
    %6 = vector.broadcast %2 : vector<128x1xf32> to vector<128x256xf32>
    %7 = arith.addf %5, %6 : vector<128x256xf32>
    %cst = arith.constant 0.000000e+00 : f32
    %8 = vector.broadcast %cst : f32 to vector<128x256xf32>
    %9 = arith.maximumf %7, %8 : vector<128x256xf32>
    %c0_5 = arith.constant 0 : index
    %c0_6 = arith.constant 0 : index
    %10 = vector.load %arg4[%c0_5, %c0_6] : memref<128x128xf32, #tpu.memory_space<vmem>>, vector<128x128xf32>
    %cst_7 = arith.constant dense<0.000000e+00> : vector<128x256xf32>
    %11 = tpu.matmul %10, %9, %cst_7 {dimension_numbers = #tpu.dot_dimension_numbers<[1], [0], [0], [1], [0, 0, 1, 1], [], []>} : vector<128x128xf32>, vector<128x256xf32>, vector<128x256xf32> -> vector<128x256xf32>
    %c0_8 = arith.constant 0 : index
    %c0_9 = arith.constant 0 : index
    %12 = vector.load %arg5[%c0_8, %c0_9] : memref<128x1xf32, #tpu.memory_space<vmem>>, vector<128x1xf32>
    %13 = vector.broadcast %12 : vector<128x1xf32> to vector<128x256xf32>
    %14 = arith.addf %11, %13 : vector<128x256xf32>
    %cst_10 = arith.constant 0.000000e+00 : f32
    %15 = vector.broadcast %cst_10 : f32 to vector<128x256xf32>
    %16 = arith.maximumf %14, %15 : vector<128x256xf32>
    %c0_11 = arith.constant 0 : index
    %c0_12 = arith.constant 0 : index
    %17 = vector.load %arg6[%c0_11, %c0_12] : memref<128x1xf32, #tpu.memory_space<vmem>>, vector<128x1xf32>
    %18 = vector.broadcast %17 : vector<128x1xf32> to vector<128x256xf32>
    %19 = arith.mulf %16, %18 : vector<128x256xf32>
    %cst_13 = arith.constant dense<0.000000e+00> : vector<256xf32>
    %20 = vector.multi_reduction <add>, %19, %cst_13 [0] : vector<128x256xf32> to vector<256xf32>
    %21 = vector.shape_cast %20 : vector<256xf32> to vector<1x256xf32>
    %c0_14 = arith.constant 0 : index
    %c0_15 = arith.constant 0 : index
    %22 = vector.load %arg7[%c0_14, %c0_15] : memref<1x1xf32, #tpu.memory_space<vmem>>, vector<1x1xf32>
    %23 = vector.broadcast %22 : vector<1x1xf32> to vector<1x256xf32>
    %24 = arith.addf %21, %23 : vector<1x256xf32>
    %c0_16 = arith.constant 0 : index
    %c0_17 = arith.constant 0 : index
    %25 = vector.load %arg8[%c0_16, %c0_17] : memref<1x256xf32, #tpu.memory_space<vmem>>, vector<1x256xf32>
    tpu.vector_store %arg8[%c0_16, %c0_17], %24 {strides = array<i32>} : memref<1x256xf32, #tpu.memory_space<vmem>>, vector<1x256xf32>,
    return
  }
  func.func @transform_0(%arg0: i32) -> (i32, i32) {
    %c0_i32 = arith.constant 0 : i32
    %c0_i32_0 = arith.constant 0 : i32
    return %c0_i32, %arg0 : i32, i32
  }
  func.func @transform_1(%arg0: i32) -> (i32, i32) {
    %c0_i32 = arith.constant 0 : i32
    %c0_i32_0 = arith.constant 0 : i32
    %c0_i32_1 = arith.constant 0 : i32
    return %c0_i32, %c0_i32_0 : i32, i32
  }
  func.func @transform_2(%arg0: i32) -> (i32, i32) {
    %c0_i32 = arith.constant 0 : i32
    %c0_i32_0 = arith.constant 0 : i32
    %c0_i32_1 = arith.constant 0 : i32
    return %c0_i32, %c0_i32_0 : i32, i32
  }
  func.func @transform_3(%arg0: i32) -> (i32, i32) {
    %c0_i32 = arith.constant 0 : i32
    %c0_i32_0 = arith.constant 0 : i32
    %c0_i32_1 = arith.constant 0 : i32
    return %c0_i32, %c0_i32_0 : i32, i32
  }
  func.func @transform_4(%arg0: i32) -> (i32, i32) {
    %c0_i32 = arith.constant 0 : i32
    %c0_i32_0 = arith.constant 0 : i32
    %c0_i32_1 = arith.constant 0 : i32
    return %c0_i32, %c0_i32_0 : i32, i32
  }
  func.func @transform_5(%arg0: i32) -> (i32, i32) {
    %c0_i32 = arith.constant 0 : i32
    %c0_i32_0 = arith.constant 0 : i32
    %c0_i32_1 = arith.constant 0 : i32
    return %c0_i32, %c0_i32_0 : i32, i32
  }
  func.func @transform_6(%arg0: i32) -> (i32, i32) {
    %c0_i32 = arith.constant 0 : i32
    %c0_i32_0 = arith.constant 0 : i32
    %c0_i32_1 = arith.constant 0 : i32
    return %c0_i32, %c0_i32_0 : i32, i32
  }
  func.func @transform_7(%arg0: i32) -> (i32, i32) {
    %c0_i32 = arith.constant 0 : i32
    %c0_i32_0 = arith.constant 0 : i32
    return %c0_i32, %arg0 : i32, i32
  }
}

</mosaic_0001>

<llo_original>
// kernel: tpu_custom_call.1
$region0: #{tpu_custom_call.1}
  #allocation0 [shape = 'u32[]', space=smem, size = 0x4, offset = 0x4, fixed_abs, tag = 'smem constant byte address 0x4 - core index']
  #allocation1 [shape = 'u32[144,128]{1,0:T(1,128)}', space=vmem, size = 0x12000, scoped, tag = 'internal scratch']
  #allocation2 [shape = 'f32[1,1]{1,0:T(1,128)S(1)}', space=vmem, size = 0x200, scoped, tag = 'scoped memory for tpu_custom_call.1']
  %s0 = inlined_call_operand.vmem [shape: f32[1,512], index: 0, kind: input, shape index: {}]
  %s1 = inlined_call_operand.vmem [shape: f32[128,1], index: 1, kind: input, shape index: {}]
  %s2 = inlined_call_operand.vmem [shape: f32[128,1], index: 2, kind: input, shape index: {}]
  %s3 = inlined_call_operand.vmem [shape: f32[128,128], index: 3, kind: input, shape index: {}]
  %s4 = inlined_call_operand.vmem [shape: f32[128,1], index: 4, kind: input, shape index: {}]
  %s5 = inlined_call_operand.vmem [shape: f32[128,1], index: 5, kind: input, shape index: {}]
  %s6 = inlined_call_operand.<no memory space> [shape: f32[1,1], index: 6, kind: input, shape index: {}]
  %s7 = inlined_call_operand.hbm [shape: f32[1,512], index: 7, kind: output, shape index: {}]
  %s8 = sld [smem:[#allocation0]]
  $region61: #{tpu_custom_call.1} parent=0
    _
  %s10 = ssub.s32 1, %s8
  %s11 = scalar_select 0, %s10, %s8
  %v12 = vstv %s6
  %13 = vst [vmem:[#allocation2] sm:$0x1] %v12
  $region1: #{tpu_custom_call.1} parent=0
    #allocation3 [shape = 'u8[2048]{0}', space=vmem, size = 0x800, scoped, tag = 'output window, operand 0']
    #allocation4 [shape = 's32[2]{0}', space=sflag, size = 0x8, scoped, tag = 'scoped memory for tpu_custom_call.1']
    %14 = vsyncpa [#allocation4], 0
    %s15 = scalar_lea.sflag [#allocation4], 1
    %16 = vsyncpa %s15, 0
    loop: start=0, step=1, limit=4
    $region2: #{tpu_custom_call.1} parent=1 // loop_pre_header
      _
    $region3: #{tpu_custom_call.1} parent=1 // loop_header
      %s18 = sphi 0, %s22
      %p19 = scmp.ge.s32.totalorder %s18, 4
      %s28 = sphi 0, %s30
      %s31 = sphi 0, %s28
      %s32 = sphi 0, %s31
      %s48 = sphi 0, %s32
      %s52 = sphi 0, %s52
      %s54 = sphi 0, %s52
      %s55 = sphi 0, %s54
      %s69 = sphi 0, %s55
      %s73 = sphi 0, %s73
      %s75 = sphi 0, %s73
      %s76 = sphi 0, %s75
      %s90 = sphi 0, %s76
      %s94 = sphi 0, %s94
      %s96 = sphi 0, %s94
      %s97 = sphi 0, %s96
      %s111 = sphi 0, %s97
      %s115 = sphi 0, %s115
      %s117 = sphi 0, %s115
      %s118 = sphi 0, %s117
      %s132 = sphi 0, %s118
      %s136 = sphi 0, %s136
      %s138 = sphi 0, %s136
      %s139 = sphi 0, %s138
      %s153 = sphi 0, %s139
      %s157 = sphi 0, %s157
      %s159 = sphi 0, %s157
      %s160 = sphi 0, %s159
      %s174 = sphi 0, %s160
      %s180 = sphi 0, %s182
      %s183 = sphi 0, %s180
      %s184 = sphi 0, %s183
      %s200 = sphi 0, %s184
    $region4: #{tpu_custom_call.1} parent=1 // loop_header_branch
      %21 = sbr.rel (%p19) target = $region8
    $region5: #{tpu_custom_call.1} parent=1 // loop_body
      %s23 = ssub.s32 %s18, 1
      %s24 = ssub.s32 %s18, 2
      %s25 = sadd.s32 %s18, 1
      %s26 = ssub.s32 %s18, %s25
      %p27 = scmp.eq.s32.totalorder %s26, 0
      %s29 = sadd.s32 %s28, 1
      %s30 = scalar_select %p27, %s28, %s29
      %p33 = pneg %p27
      %p34 = scmp.eq.s32.totalorder %s18, 1
      %p35 = por %p33, %p34
      %p36 = scmp.ne.s32.totalorder %s28, %s31
      %p37 = scmp.eq.s32.totalorder %s18, 0
      %p38 = por %p36, %p37
      %p39 = scmp.ne.s32.totalorder %s28, %s31
      %p40 = scmp.eq.s32.totalorder %s23, 1
      %p41 = por %p39, %p40
      %p42 = scmp.ne.s32.totalorder %s31, %s32
      %p43 = scmp.eq.s32.totalorder %s23, 0
      %p44 = por %p42, %p43
      %p45 = scmp.ne.s32.totalorder %s31, %s32
      %p46 = scmp.eq.s32.totalorder %s24, 1
      %p47 = por %p45, %p46
      %p49 = scmp.ne.s32.totalorder %s32, %s48
      %p50 = scmp.eq.s32.totalorder %s24, 0
      %p51 = por %p49, %p50
      %s53 = sadd.s32 %s52, 1
      %p56 = scmp.eq.s32.totalorder %s18, 1
      %p57 = scmp.ne.s32.totalorder %s52, %s54
      %p58 = scmp.eq.s32.totalorder %s18, 0
      %p59 = por %p57, %p58
      %p60 = scmp.ne.s32.totalorder %s52, %s54
      %p61 = scmp.eq.s32.totalorder %s23, 1
      %p62 = por %p60, %p61
      %p63 = scmp.ne.s32.totalorder %s54, %s55
      %p64 = scmp.eq.s32.totalorder %s23, 0
      %p65 = por %p63, %p64
      %p66 = scmp.ne.s32.totalorder %s54, %s55
      %p67 = scmp.eq.s32.totalorder %s24, 1
      %p68 = por %p66, %p67
      %p70 = scmp.ne.s32.totalorder %s55, %s69
      %p71 = scmp.eq.s32.totalorder %s24, 0
      %p72 = por %p70, %p71
      %s74 = sadd.s32 %s73, 1
      %p77 = scmp.eq.s32.totalorder %s18, 1
      %p78 = scmp.ne.s32.totalorder %s73, %s75
      %p79 = scmp.eq.s32.totalorder %s18, 0
      %p80 = por %p78, %p79
      %p81 = scmp.ne.s32.totalorder %s73, %s75
      %p82 = scmp.eq.s32.totalorder %s23, 1
      %p83 = por %p81, %p82
      %p84 = scmp.ne.s32.totalorder %s75, %s76
      %p85 = scmp.eq.s32.totalorder %s23, 0
      %p86 = por %p84, %p85
      %p87 = scmp.ne.s32.totalorder %s75, %s76
      %p88 = scmp.eq.s32.totalorder %s24, 1
      %p89 = por %p87, %p88
      %p91 = scmp.ne.s32.totalorder %s76, %s90
      %p92 = scmp.eq.s32.totalorder %s24, 0
      %p93 = por %p91, %p92
      %s95 = sadd.s32 %s94, 1
      %p98 = scmp.eq.s32.totalorder %s18, 1
      %p99 = scmp.ne.s32.totalorder %s94, %s96
      %p100 = scmp.eq.s32.totalorder %s18, 0
      %p101 = por %p99, %p100
      %p102 = scmp.ne.s32.totalorder %s94, %s96
      %p103 = scmp.eq.s32.totalorder %s23, 1
      %p104 = por %p102, %p103
      %p105 = scmp.ne.s32.totalorder %s96, %s97
      %p106 = scmp.eq.s32.totalorder %s23, 0
      %p107 = por %p105, %p106
      %p108 = scmp.ne.s32.totalorder %s96, %s97
      %p109 = scmp.eq.s32.totalorder %s24, 1
      %p110 = por %p108, %p109
      %p112 = scmp.ne.s32.totalorder %s97, %s111
      %p113 = scmp.eq.s32.totalorder %s24, 0
      %p114 = por %p112, %p113
      %s116 = sadd.s32 %s115, 1
      %p119 = scmp.eq.s32.totalorder %s18, 1
      %p120 = scmp.ne.s32.totalorder %s115, %s117
      %p121 = scmp.eq.s32.totalorder %s18, 0
      %p122 = por %p120, %p121
      %p123 = scmp.ne.s32.totalorder %s115, %s117
      %p124 = scmp.eq.s32.totalorder %s23, 1
      %p125 = por %p123, %p124
      %p126 = scmp.ne.s32.totalorder %s117, %s118
      %p127 = scmp.eq.s32.totalorder %s23, 0
      %p128 = por %p126, %p127
      %p129 = scmp.ne.s32.totalorder %s117, %s118
      %p130 = scmp.eq.s32.totalorder %s24, 1
      %p131 = por %p129, %p130
      %p133 = scmp.ne.s32.totalorder %s118, %s132
      %p134 = scmp.eq.s32.totalorder %s24, 0
      %p135 = por %p133, %p134
      %s137 = sadd.s32 %s136, 1
      %p140 = scmp.eq.s32.totalorder %s18, 1
      %p141 = scmp.ne.s32.totalorder %s136, %s138
      %p142 = scmp.eq.s32.totalorder %s18, 0
      %p143 = por %p141, %p142
      %p144 = scmp.ne.s32.totalorder %s136, %s138
      %p145 = scmp.eq.s32.totalorder %s23, 1
      %p146 = por %p144, %p145
      %p147 = scmp.ne.s32.totalorder %s138, %s139
      %p148 = scmp.eq.s32.totalorder %s23, 0
      %p149 = por %p147, %p148
      %p150 = scmp.ne.s32.totalorder %s138, %s139
      %p151 = scmp.eq.s32.totalorder %s24, 1
      %p152 = por %p150, %p151
      %p154 = scmp.ne.s32.totalorder %s139, %s153
      %p155 = scmp.eq.s32.totalorder %s24, 0
      %p156 = por %p154, %p155
      %s158 = sadd.s32 %s157, 1
      %p161 = scmp.eq.s32.totalorder %s18, 1
      %p162 = scmp.ne.s32.totalorder %s157, %s159
      %p163 = scmp.eq.s32.totalorder %s18, 0
      %p164 = por %p162, %p163
      %p165 = scmp.ne.s32.totalorder %s157, %s159
      %p166 = scmp.eq.s32.totalorder %s23, 1
      %p167 = por %p165, %p166
      %p168 = scmp.ne.s32.totalorder %s159, %s160
      %p169 = scmp.eq.s32.totalorder %s23, 0
      %p170 = por %p168, %p169
      %p171 = scmp.ne.s32.totalorder %s159, %s160
      %p172 = scmp.eq.s32.totalorder %s24, 1
      %p173 = por %p171, %p172
      %p175 = scmp.ne.s32.totalorder %s160, %s174
      %p176 = scmp.eq.s32.totalorder %s24, 0
      %p177 = por %p175, %p176
      %s178 = ssub.s32 %s18, %s25
      %p179 = scmp.eq.s32.totalorder %s178, 0
      %s181 = sadd.s32 %s180, 1
      %s182 = scalar_select %p179, %s180, %s181
      %p185 = pneg %p179
      %p186 = scmp.eq.s32.totalorder %s18, 1
      %p187 = por %p185, %p186
      %p188 = scmp.ne.s32.totalorder %s180, %s183
      %p189 = scmp.eq.s32.totalorder %s18, 0
      %p190 = por %p188, %p189
      %p191 = scmp.ne.s32.totalorder %s180, %s183
      %p192 = scmp.eq.s32.totalorder %s23, 1
      %p193 = por %p191, %p192
      %p194 = scmp.ne.s32.totalorder %s183, %s184
      %p195 = scmp.eq.s32.totalorder %s23, 0
      %p196 = por %p194, %p195
      %p197 = scmp.ne.s32.totalorder %s183, %s184
      %p198 = scmp.eq.s32.totalorder %s24, 1
      %p199 = por %p197, %p198
      %p201 = scmp.ne.s32.totalorder %s184, %s200
      %p202 = scmp.eq.s32.totalorder %s24, 0
      %p203 = por %p201, %p202
      %p204 = scmp.le.s32.totalorder 1, %s18
      %p205 = scmp.lt.s32.totalorder %s18, 3
      %p206 = pnand %p204, %p205
      %p207 = pneg %p206
      // Predicated region
      $region9: #{tpu_custom_call.1} parent=5 // pred_check
        _
      $region10: #{tpu_custom_call.1} parent=5 // pred_check_branch
        %209 = sbr.rel (%p206) target = $region12
      $region11: #{tpu_custom_call.1} parent=5 // pred_region
        %s210 = ssub.s32 %s18, 1
        // Predicated region
        $region13: #{tpu_custom_call.1} parent=11 // pred_check
          %p211 = pneg %p65
        $region14: #{tpu_custom_call.1} parent=11 // pred_check_branch
          %213 = sbr.rel (%p211) target = $region16
        $region15: #{tpu_custom_call.1} parent=11 // pred_region
          _
        $region16: #{tpu_custom_call.1} parent=11 // pred_fallthru
          _
        // Predicated region
        $region17: #{tpu_custom_call.1} parent=11 // pred_check
          %p214 = pneg %p86
        $region18: #{tpu_custom_call.1} parent=11 // pred_check_branch
          %216 = sbr.rel (%p214) target = $region20
        $region19: #{tpu_custom_call.1} parent=11 // pred_region
          _
        $region20: #{tpu_custom_call.1} parent=11 // pred_fallthru
          _
        // Predicated region
        $region21: #{tpu_custom_call.1} parent=11 // pred_check
          %p217 = pneg %p107
        $region22: #{tpu_custom_call.1} parent=11 // pred_check_branch
          %219 = sbr.rel (%p217) target = $region24
        $region23: #{tpu_custom_call.1} parent=11 // pred_region
          _
        $region24: #{tpu_custom_call.1} parent=11 // pred_fallthru
          _
        // Predicated region
        $region25: #{tpu_custom_call.1} parent=11 // pred_check
          %p220 = pneg %p128
        $region26: #{tpu_custom_call.1} parent=11 // pred_check_branch
          %222 = sbr.rel (%p220) target = $region28
        $region27: #{tpu_custom_call.1} parent=11 // pred_region
          _
        $region28: #{tpu_custom_call.1} parent=11 // pred_fallthru
          _
        // Predicated region
        $region29: #{tpu_custom_call.1} parent=11 // pred_check
          %p223 = pneg %p149
        $region30: #{tpu_custom_call.1} parent=11 // pred_check_branch
          %225 = sbr.rel (%p223) target = $region32
        $region31: #{tpu_custom_call.1} parent=11 // pred_region
          _
        $region32: #{tpu_custom_call.1} parent=11 // pred_fallthru
          _
        // Predicated region
        $region33: #{tpu_custom_call.1} parent=11 // pred_check
          %p226 = pneg %p170
        $region34: #{tpu_custom_call.1} parent=11 // pred_check_branch
          %228 = sbr.rel (%p226) target = $region36
        $region35: #{tpu_custom_call.1} parent=11 // pred_region
          _
        $region36: #{tpu_custom_call.1} parent=11 // pred_fallthru
          _
      $region12: #{tpu_custom_call.1} parent=5 // pred_fallthru
        _
      %p229 = scmp.lt.s32.totalorder %s18, 2
      // Predicated region
      $region37: #{tpu_custom_call.1} parent=5 // pred_check
        %p230 = pneg %p229
      $region38: #{tpu_custom_call.1} parent=5 // pred_check_branch
        %232 = sbr.rel (%p230) target = $region40
      $region39: #{tpu_custom_call.1} parent=5 // pred_region
        // Predicated region
        $region41: #{tpu_custom_call.1} parent=39 // pred_check
          %p233 = pneg %p38
        $region42: #{tpu_custom_call.1} parent=39 // pred_check_branch
          %235 = sbr.rel (%p233) target = $region44
        $region43: #{tpu_custom_call.1} parent=39 // pred_region
          %s236 = smul.u32 2, %s18
          %p237 = scmp.lt.s32.totalorder %s236, 3
          %s238 = scalar_select %p237, %s236, 3
          %s239 = scalar_lea.vmem %s0, %s238
          %s240 = smul.u32 2, %s18
        $region44: #{tpu_custom_call.1} parent=39 // pred_fallthru
          _
      $region40: #{tpu_custom_call.1} parent=5 // pred_fallthru
        _
      %p241 = scmp.le.s32.totalorder 1, %s18
      %p242 = scmp.lt.s32.totalorder %s18, 3
      %p243 = pnand %p241, %p242
      %p244 = pneg %p243
      // Predicated region
      $region45: #{tpu_custom_call.1} parent=5 // pred_check
        _
      $region46: #{tpu_custom_call.1} parent=5 // pred_check_branch
        %246 = sbr.rel (%p243) target = $region48
      $region47: #{tpu_custom_call.1} parent=5 // pred_region
        %s247 = ssub.s32 %s18, 1
        %s248 = smul.u32 2, %s23
        %p249 = scmp.lt.s32.totalorder %s248, 3
        %s250 = scalar_select %p249, %s248, 3
        %s251 = scalar_lea.vmem %s0, %s250
        %p252 = pneg %p44
        %p253 = pneg %p41
        %p254 = pneg %p65
        %p255 = pneg %p62
        %p256 = pneg %p86
        %p257 = pneg %p83
        %p258 = pneg %p107
        %p259 = pneg %p104
        %p260 = pneg %p128
        %p261 = pneg %p125
        %p262 = pneg %p149
        %p263 = pneg %p146
        %p264 = pneg %p170
        %p265 = pneg %p167
        %p266 = pneg %p196
        %p267 = pneg %p193
        %s268 = sand.u32 %s183, 1
        %s269 = scalar_lea.sflag [#allocation4], %s268
        %s270 = sand.u32 %s183, 1
        %s271 = smul.addr %s270, 2
        %s272 = scalar_lea.vmem [#allocation3], %s271
        %s273 = smul.u32 2, %s23
        %p274 = scmp.lt.s32.totalorder %s273, 3
        %s275 = scalar_select %p274, %s273, 3
        %s276 = scalar_lea.vmem %s0, %s275
        %s277 = smul.u32 2, %s23
        %s278 = smul.u32 2, %s23
        %v279 = vld [vmem:[%s276] sm:$0x3]
        %v280 = vld [vmem:[%s1] sm:$0xff]
        %v281 = vld [vmem:[%s1 + $0x8] sm:$0xff]
        %v282 = vld [vmem:[%s1 + $0x10] sm:$0xff]
        %v283 = vld [vmem:[%s1 + $0x18] sm:$0xff]
        %v284 = vld [vmem:[%s1 + $0x20] sm:$0xff]
        %v285 = vld [vmem:[%s1 + $0x28] sm:$0xff]
        %v286 = vld [vmem:[%s1 + $0x30] sm:$0xff]
        %v287 = vld [vmem:[%s1 + $0x38] sm:$0xff]
        %v288 = vld [vmem:[%s1 + $0x40] sm:$0xff]
        %v289 = vld [vmem:[%s1 + $0x48] sm:$0xff]
        %v290 = vld [vmem:[%s1 + $0x50] sm:$0xff]
        %v291 = vld [vmem:[%s1 + $0x58] sm:$0xff]
        %v292 = vld [vmem:[%s1 + $0x60] sm:$0xff]
        %v293 = vld [vmem:[%s1 + $0x68] sm:$0xff]
        %v294 = vld [vmem:[%s1 + $0x70] sm:$0xff]
        %v295 = vld [vmem:[%s1 + $0x78] sm:$0xff]
        %v296 = vld [vmem:[%s2] sm:$0xff]
        %v297 = vld [vmem:[%s2 + $0x8] sm:$0xff]
        %v298 = vld [vmem:[%s2 + $0x10] sm:$0xff]
        %v299 = vld [vmem:[%s2 + $0x18] sm:$0xff]
        %v300 = vld [vmem:[%s2 + $0x20] sm:$0xff]
        %v301 = vld [vmem:[%s2 + $0x28] sm:$0xff]
        %v302 = vld [vmem:[%s2 + $0x30] sm:$0xff]
        %v303 = vld [vmem:[%s2 + $0x38] sm:$0xff]
        %v304 = vld [vmem:[%s2 + $0x40] sm:$0xff]
        %v305 = vld [vmem:[%s2 + $0x48] sm:$0xff]
        %v306 = vld [vmem:[%s2 + $0x50] sm:$0xff]
        %v307 = vld [vmem:[%s2 + $0x58] sm:$0xff]
        %v308 = vld [vmem:[%s2 + $0x60] sm:$0xff]
        %v309 = vld [vmem:[%s2 + $0x68] sm:$0xff]
        %v310 = vld [vmem:[%s2 + $0x70] sm:$0xff]
        %v311 = vld [vmem:[%s2 + $0x78] sm:$0xff]
        %313 = vset.pattern.permute.xlu0 0
        %314 = vperm.xlu0 %313, %v280
        %v315 = vpop.permute.xlu0 %314
        %318 = vset.pattern.permute.xlu0 0
        %319 = vperm.xlu0 %318, %v281
        %v320 = vpop.permute.xlu0 %319
        %323 = vset.pattern.permute.xlu0 0
        %324 = vperm.xlu0 %323, %v282
        %v325 = vpop.permute.xlu0 %324
        %328 = vset.pattern.permute.xlu0 0
        %329 = vperm.xlu0 %328, %v283
        %v330 = vpop.permute.xlu0 %329
        %333 = vset.pattern.permute.xlu0 0
        %334 = vperm.xlu0 %333, %v284
        %v335 = vpop.permute.xlu0 %334
        %338 = vset.pattern.permute.xlu0 0
        %339 = vperm.xlu0 %338, %v285
        %v340 = vpop.permute.xlu0 %339
        %343 = vset.pattern.permute.xlu0 0
        %344 = vperm.xlu0 %343, %v286
        %v345 = vpop.permute.xlu0 %344
        %348 = vset.pattern.permute.xlu0 0
        %349 = vperm.xlu0 %348, %v287
        %v350 = vpop.permute.xlu0 %349
        %353 = vset.pattern.permute.xlu0 0
        %354 = vperm.xlu0 %353, %v288
        %v355 = vpop.permute.xlu0 %354
        %358 = vset.pattern.permute.xlu0 0
        %359 = vperm.xlu0 %358, %v289
        %v360 = vpop.permute.xlu0 %359
        %363 = vset.pattern.permute.xlu0 0
        %364 = vperm.xlu0 %363, %v290
        %v365 = vpop.permute.xlu0 %364
        %368 = vset.pattern.permute.xlu0 0
        %369 = vperm.xlu0 %368, %v291
        %v370 = vpop.permute.xlu0 %369
        %373 = vset.pattern.permute.xlu0 0
        %374 = vperm.xlu0 %373, %v292
        %v375 = vpop.permute.xlu0 %374
        %378 = vset.pattern.permute.xlu0 0
        %379 = vperm.xlu0 %378, %v293
        %v380 = vpop.permute.xlu0 %379
        %383 = vset.pattern.permute.xlu0 0
        %384 = vperm.xlu0 %383, %v294
        %v385 = vpop.permute.xlu0 %384
        %388 = vset.pattern.permute.xlu0 0
        %389 = vperm.xlu0 %388, %v295
        %v390 = vpop.permute.xlu0 %389
        %v393 = vlaneseq
        %v394 = vshrl.u32 %v393, 7
        %v395 = vsub.s32 0, %v394
        %v396 = vrot.slane %v279, %v395
        %v397 = vlaneseq
        %v398 = vshrl.u32 %v397, 7
        %v399 = vsub.s32 1, %v398
        %v400 = vrot.slane %v279, %v399
        %v403 = vmul.f32 %v315, %v396
        %v404 = vmul.f32 %v315, %v400
        %v405 = vmul.f32 %v320, %v396
        %v406 = vmul.f32 %v320, %v400
        %v407 = vmul.f32 %v325, %v396
        %v408 = vmul.f32 %v325, %v400
        %v409 = vmul.f32 %v330, %v396
        %v410 = vmul.f32 %v330, %v400
        %v411 = vmul.f32 %v335, %v396
        %v412 = vmul.f32 %v335, %v400
        %v413 = vmul.f32 %v340, %v396
        %v414 = vmul.f32 %v340, %v400
        %v415 = vmul.f32 %v345, %v396
        %v416 = vmul.f32 %v345, %v400
        %v417 = vmul.f32 %v350, %v396
        %v418 = vmul.f32 %v350, %v400
        %v419 = vmul.f32 %v355, %v396
        %v420 = vmul.f32 %v355, %v400
        %v421 = vmul.f32 %v360, %v396
        %v422 = vmul.f32 %v360, %v400
        %v423 = vmul.f32 %v365, %v396
        %v424 = vmul.f32 %v365, %v400
        %v425 = vmul.f32 %v370, %v396
        %v426 = vmul.f32 %v370, %v400
        %v427 = vmul.f32 %v375, %v396
        %v428 = vmul.f32 %v375, %v400
        %v429 = vmul.f32 %v380, %v396
        %v430 = vmul.f32 %v380, %v400
        %v431 = vmul.f32 %v385, %v396
        %v432 = vmul.f32 %v385, %v400
        %v433 = vmul.f32 %v390, %v396
        %v434 = vmul.f32 %v390, %v400
        %436 = vset.pattern.permute.xlu0 0
        %437 = vperm.xlu0 %436, %v296
        %v438 = vpop.permute.xlu0 %437
        %441 = vset.pattern.permute.xlu0 0
        %442 = vperm.xlu0 %441, %v297
        %v443 = vpop.permute.xlu0 %442
        %446 = vset.pattern.permute.xlu0 0
        %447 = vperm.xlu0 %446, %v298
        %v448 = vpop.permute.xlu0 %447
        %451 = vset.pattern.permute.xlu0 0
        %452 = vperm.xlu0 %451, %v299
        %v453 = vpop.permute.xlu0 %452
        %456 = vset.pattern.permute.xlu0 0
        %457 = vperm.xlu0 %456, %v300
        %v458 = vpop.permute.xlu0 %457
        %461 = vset.pattern.permute.xlu0 0
        %462 = vperm.xlu0 %461, %v301
        %v463 = vpop.permute.xlu0 %462
        %466 = vset.pattern.permute.xlu0 0
        %467 = vperm.xlu0 %466, %v302
        %v468 = vpop.permute.xlu0 %467
        %471 = vset.pattern.permute.xlu0 0
        %472 = vperm.xlu0 %471, %v303
        %v473 = vpop.permute.xlu0 %472
        %476 = vset.pattern.permute.xlu0 0
        %477 = vperm.xlu0 %476, %v304
        %v478 = vpop.permute.xlu0 %477
        %481 = vset.pattern.permute.xlu0 0
        %482 = vperm.xlu0 %481, %v305
        %v483 = vpop.permute.xlu0 %482
        %486 = vset.pattern.permute.xlu0 0
        %487 = vperm.xlu0 %486, %v306
        %v488 = vpop.permute.xlu0 %487
        %491 = vset.pattern.permute.xlu0 0
        %492 = vperm.xlu0 %491, %v307
        %v493 = vpop.permute.xlu0 %492
        %496 = vset.pattern.permute.xlu0 0
        %497 = vperm.xlu0 %496, %v308
        %v498 = vpop.permute.xlu0 %497
        %501 = vset.pattern.permute.xlu0 0
        %502 = vperm.xlu0 %501, %v309
        %v503 = vpop.permute.xlu0 %502
        %506 = vset.pattern.permute.xlu0 0
        %507 = vperm.xlu0 %506, %v310
        %v508 = vpop.permute.xlu0 %507
        %511 = vset.pattern.permute.xlu0 0
        %512 = vperm.xlu0 %511, %v311
        %v513 = vpop.permute.xlu0 %512
        %v515 = vadd.f32 %v403, %v438
        %v516 = vadd.f32 %v404, %v438
        %v517 = vadd.f32 %v405, %v443
        %v518 = vadd.f32 %v406, %v443
        %v519 = vadd.f32 %v407, %v448
        %v520 = vadd.f32 %v408, %v448
        %v521 = vadd.f32 %v409, %v453
        %v522 = vadd.f32 %v410, %v453
        %v523 = vadd.f32 %v411, %v458
        %v524 = vadd.f32 %v412, %v458
        %v525 = vadd.f32 %v413, %v463
        %v526 = vadd.f32 %v414, %v463
        %v527 = vadd.f32 %v415, %v468
        %v528 = vadd.f32 %v416, %v468
        %v529 = vadd.f32 %v417, %v473
        %v530 = vadd.f32 %v418, %v473
        %v531 = vadd.f32 %v419, %v478
        %v532 = vadd.f32 %v420, %v478
        %v533 = vadd.f32 %v421, %v483
        %v534 = vadd.f32 %v422, %v483
        %v535 = vadd.f32 %v423, %v488
        %v536 = vadd.f32 %v424, %v488
        %v537 = vadd.f32 %v425, %v493
        %v538 = vadd.f32 %v426, %v493
        %v539 = vadd.f32 %v427, %v498
        %v540 = vadd.f32 %v428, %v498
        %v541 = vadd.f32 %v429, %v503
        %v542 = vadd.f32 %v430, %v503
        %v543 = vadd.f32 %v431, %v508
        %v544 = vadd.f32 %v432, %v508
        %v545 = vadd.f32 %v433, %v513
        %v546 = vadd.f32 %v434, %v513
        %v547 = vmax.f32 %v515, 0.0
        %v548 = vmax.f32 %v516, 0.0
        %v549 = vmax.f32 %v517, 0.0
        %v550 = vmax.f32 %v518, 0.0
        %v551 = vmax.f32 %v519, 0.0
        %v552 = vmax.f32 %v520, 0.0
        %v553 = vmax.f32 %v521, 0.0
        %v554 = vmax.f32 %v522, 0.0
        %v555 = vmax.f32 %v523, 0.0
        %v556 = vmax.f32 %v524, 0.0
        %v557 = vmax.f32 %v525, 0.0
        %v558 = vmax.f32 %v526, 0.0
        %v559 = vmax.f32 %v527, 0.0
        %v560 = vmax.f32 %v528, 0.0
        %v561 = vmax.f32 %v529, 0.0
        %v562 = vmax.f32 %v530, 0.0
        %v563 = vmax.f32 %v531, 0.0
        %v564 = vmax.f32 %v532, 0.0
        %v565 = vmax.f32 %v533, 0.0
        %v566 = vmax.f32 %v534, 0.0
        %v567 = vmax.f32 %v535, 0.0
        %v568 = vmax.f32 %v536, 0.0
        %v569 = vmax.f32 %v537, 0.0
        %v570 = vmax.f32 %v538, 0.0
        %v571 = vmax.f32 %v539, 0.0
        %v572 = vmax.f32 %v540, 0.0
        %v573 = vmax.f32 %v541, 0.0
        %v574 = vmax.f32 %v542, 0.0
        %v575 = vmax.f32 %v543, 0.0
        %v576 = vmax.f32 %v544, 0.0
        %v577 = vmax.f32 %v545, 0.0
        %v578 = vmax.f32 %v546, 0.0
        %v579 = vld [vmem:[%s3] sm:$0xff]
        %v580 = vld [vmem:[%s3 + $0x8] sm:$0xff]
        %v581 = vld [vmem:[%s3 + $0x10] sm:$0xff]
        %v582 = vld [vmem:[%s3 + $0x18] sm:$0xff]
        %v583 = vld [vmem:[%s3 + $0x20] sm:$0xff]
        %v584 = vld [vmem:[%s3 + $0x28] sm:$0xff]
        %v585 = vld [vmem:[%s3 + $0x30] sm:$0xff]
        %v586 = vld [vmem:[%s3 + $0x38] sm:$0xff]
        %v587 = vld [vmem:[%s3 + $0x40] sm:$0xff]
        %v588 = vld [vmem:[%s3 + $0x48] sm:$0xff]
        %v589 = vld [vmem:[%s3 + $0x50] sm:$0xff]
        %v590 = vld [vmem:[%s3 + $0x58] sm:$0xff]
        %v591 = vld [vmem:[%s3 + $0x60] sm:$0xff]
        %v592 = vld [vmem:[%s3 + $0x68] sm:$0xff]
        %v593 = vld [vmem:[%s3 + $0x70] sm:$0xff]
        %v594 = vld [vmem:[%s3 + $0x78] sm:$0xff]
        %v595 = vld [vmem:[%s4] sm:$0xff]
        %v596 = vld [vmem:[%s4 + $0x8] sm:$0xff]
        %v597 = vld [vmem:[%s4 + $0x10] sm:$0xff]
        %v598 = vld [vmem:[%s4 + $0x18] sm:$0xff]
        %v599 = vld [vmem:[%s4 + $0x20] sm:$0xff]
        %v600 = vld [vmem:[%s4 + $0x28] sm:$0xff]
        %v601 = vld [vmem:[%s4 + $0x30] sm:$0xff]
        %v602 = vld [vmem:[%s4 + $0x38] sm:$0xff]
        %v603 = vld [vmem:[%s4 + $0x40] sm:$0xff]
        %v604 = vld [vmem:[%s4 + $0x48] sm:$0xff]
        %v605 = vld [vmem:[%s4 + $0x50] sm:$0xff]
        %v606 = vld [vmem:[%s4 + $0x58] sm:$0xff]
        %v607 = vld [vmem:[%s4 + $0x60] sm:$0xff]
        %v608 = vld [vmem:[%s4 + $0x68] sm:$0xff]
        %v609 = vld [vmem:[%s4 + $0x70] sm:$0xff]
        %v610 = vld [vmem:[%s4 + $0x78] sm:$0xff]
        %612 = vset.pattern.permute.xlu0 0
        %613 = vperm.xlu0 %612, %v595
        %v614 = vpop.permute.xlu0 %613
        %617 = vset.pattern.permute.xlu0 0
        %618 = vperm.xlu0 %617, %v596
        %v619 = vpop.permute.xlu0 %618
        %622 = vset.pattern.permute.xlu0 0
        %623 = vperm.xlu0 %622, %v597
        %v624 = vpop.permute.xlu0 %623
        %627 = vset.pattern.permute.xlu0 0
        %628 = vperm.xlu0 %627, %v598
        %v629 = vpop.permute.xlu0 %628
        %632 = vset.pattern.permute.xlu0 0
        %633 = vperm.xlu0 %632, %v599
        %v634 = vpop.permute.xlu0 %633
        %637 = vset.pattern.permute.xlu0 0
        %638 = vperm.xlu0 %637, %v600
        %v639 = vpop.permute.xlu0 %638
        %642 = vset.pattern.permute.xlu0 0
        %643 = vperm.xlu0 %642, %v601
        %v644 = vpop.permute.xlu0 %643
        %647 = vset.pattern.permute.xlu0 0
        %648 = vperm.xlu0 %647, %v602
        %v649 = vpop.permute.xlu0 %648
        %652 = vset.pattern.permute.xlu0 0
        %653 = vperm.xlu0 %652, %v603
        %v654 = vpop.permute.xlu0 %653
        %657 = vset.pattern.permute.xlu0 0
        %658 = vperm.xlu0 %657, %v604
        %v659 = vpop.permute.xlu0 %658
        %662 = vset.pattern.permute.xlu0 0
        %663 = vperm.xlu0 %662, %v605
        %v664 = vpop.permute.xlu0 %663
        %667 = vset.pattern.permute.xlu0 0
        %668 = vperm.xlu0 %667, %v606
        %v669 = vpop.permute.xlu0 %668
        %672 = vset.pattern.permute.xlu0 0
        %673 = vperm.xlu0 %672, %v607
        %v674 = vpop.permute.xlu0 %673
        %677 = vset.pattern.permute.xlu0 0
        %678 = vperm.xlu0 %677, %v608
        %v679 = vpop.permute.xlu0 %678
        %682 = vset.pattern.permute.xlu0 0
        %683 = vperm.xlu0 %682, %v609
        %v684 = vpop.permute.xlu0 %683
        %687 = vset.pattern.permute.xlu0 0
        %688 = vperm.xlu0 %687, %v610
        %v689 = vpop.permute.xlu0 %688
        %691 = vmatprep.subr.mxu0 %v548
        %692 = vmatpush1.msra.mxu0 %v547
        %693 = vmatprep.subr.mxu0 %v550
        %694 = vmatpush1.msra.mxu0 %v549
        %695 = vmatprep.subr.mxu0 %v552
        %696 = vmatpush1.msra.mxu0 %v551
        %697 = vmatprep.subr.mxu0 %v554
        %698 = vmatpush1.msra.mxu0 %v553
        %699 = vmatprep.subr.mxu0 %v556
        %700 = vmatpush1.msra.mxu0 %v555
        %701 = vmatprep.subr.mxu0 %v558
        %702 = vmatpush1.msra.mxu0 %v557
        %703 = vmatprep.subr.mxu0 %v560
        %704 = vmatpush1.msra.mxu0 %v559
        %705 = vmatprep.subr.mxu0 %v562
        %706 = vmatpush1.msra.mxu0 %v561
        %707 = vmatprep.subr.mxu0 %v564
        %708 = vmatpush1.msra.mxu0 %v563
        %709 = vmatprep.subr.mxu0 %v566
        %710 = vmatpush1.msra.mxu0 %v565
        %711 = vmatprep.subr.mxu0 %v568
        %712 = vmatpush1.msra.mxu0 %v567
        %713 = vmatprep.subr.mxu0 %v570
        %714 = vmatpush1.msra.mxu0 %v569
        %715 = vmatprep.subr.mxu0 %v572
        %716 = vmatpush1.msra.mxu0 %v571
        %717 = vmatprep.subr.mxu0 %v574
        %718 = vmatpush1.msra.mxu0 %v573
        %719 = vmatprep.subr.mxu0 %v576
        %720 = vmatpush1.msra.mxu0 %v575
        %721 = vmatprep.subr.mxu0 %v578
        %722 = vmatpush1.msra.mxu0 %v577
        %723 = vmatprep.subr.mxu0 0.0
        %724 = vmatpush1.msra.mxu0 0.0
        %725 = vmatprep.subr.mxu0 0.0
        %726 = vmatpush1.msra.mxu0 0.0
        %727 = vmatprep.subr.mxu0 0.0
        %728 = vmatpush1.msra.mxu0 0.0
        %729 = vmatprep.subr.mxu0 0.0
        %730 = vmatpush1.msra.mxu0 0.0
        %731 = vmatprep.subr.mxu0 0.0
        %732 = vmatpush1.msra.mxu0 0.0
        %733 = vmatprep.subr.mxu0 0.0
        %734 = vmatpush1.msra.mxu0 0.0
        %735 = vmatprep.subr.mxu0 0.0
        %736 = vmatpush1.msra.mxu0 0.0
        %737 = vmatprep.subr.mxu0 0.0
        %738 = vmatpush1.msra.mxu0 0.0
        %739 = vmatprep.subr.mxu0 0.0
        %740 = vmatpush1.msra.mxu0 0.0
        %741 = vmatprep.subr.mxu0 0.0
        %742 = vmatpush1.msra.mxu0 0.0
        %743 = vmatprep.subr.mxu0 0.0
        %744 = vmatpush1.msra.mxu0 0.0
        %745 = vmatprep.subr.mxu0 0.0
        %746 = vmatpush1.msra.mxu0 0.0
        %747 = vmatprep.subr.mxu0 0.0
        %748 = vmatpush1.msra.mxu0 0.0
        %749 = vmatprep.subr.mxu0 0.0
        %750 = vmatpush1.msra.mxu0 0.0
        %751 = vmatprep.subr.mxu0 0.0
        %752 = vmatpush1.msra.mxu0 0.0
        %753 = vmatprep.subr.mxu0 0.0
        %754 = vmatpush1.msra.mxu0 0.0
        %755 = vmatprep.mubr.f32.mxu0 0.0
        %756 = vmatmul.mubr.f32.gmra.mrb[0].mxu0 %v579
        %v757 = vpop.f32.mrb[0].mxu0
        %v758 = vadd.f32 %v614, %v757
        %v759 = vpop.f32.mrb[0].mxu0
        %v760 = vadd.f32 %v614, %v759
        %761 = vmatprep.mubr.f32.mxu0 0.0
        %762 = vmatmul.mubr.f32.gmra.mrb[0].mxu0 %v580
        %v763 = vpop.f32.mrb[0].mxu0
        %v764 = vadd.f32 %v619, %v763
        %v765 = vpop.f32.mrb[0].mxu0
        %v766 = vadd.f32 %v619, %v765
        %767 = vmatprep.mubr.f32.mxu0 0.0
        %768 = vmatmul.mubr.f32.gmra.mrb[0].mxu0 %v581
        %v769 = vpop.f32.mrb[0].mxu0
        %v770 = vadd.f32 %v624, %v769
        %v771 = vpop.f32.mrb[0].mxu0
        %v772 = vadd.f32 %v624, %v771
        %773 = vmatprep.mubr.f32.mxu0 0.0
        %774 = vmatmul.mubr.f32.gmra.mrb[0].mxu0 %v582
        %v775 = vpop.f32.mrb[0].mxu0
        %v776 = vadd.f32 %v629, %v775
        %v777 = vpop.f32.mrb[0].mxu0
        %v778 = vadd.f32 %v629, %v777
        %779 = vmatprep.mubr.f32.mxu0 0.0
        %780 = vmatmul.mubr.f32.gmra.mrb[0].mxu0 %v583
        %v781 = vpop.f32.mrb[0].mxu0
        %v782 = vadd.f32 %v634, %v781
        %v783 = vpop.f32.mrb[0].mxu0
        %v784 = vadd.f32 %v634, %v783
        %785 = vmatprep.mubr.f32.mxu0 0.0
        %786 = vmatmul.mubr.f32.gmra.mrb[0].mxu0 %v584
        %v787 = vpop.f32.mrb[0].mxu0
        %v788 = vadd.f32 %v639, %v787
        %v789 = vpop.f32.mrb[0].mxu0
        %v790 = vadd.f32 %v639, %v789
        %791 = vmatprep.mubr.f32.mxu0 0.0
        %792 = vmatmul.mubr.f32.gmra.mrb[0].mxu0 %v585
        %v793 = vpop.f32.mrb[0].mxu0
        %v794 = vadd.f32 %v644, %v793
        %v795 = vpop.f32.mrb[0].mxu0
        %v796 = vadd.f32 %v644, %v795
        %797 = vmatprep.mubr.f32.mxu0 0.0
        %798 = vmatmul.mubr.f32.gmra.mrb[0].mxu0 %v586
        %v799 = vpop.f32.mrb[0].mxu0
        %v800 = vadd.f32 %v649, %v799
        %v801 = vpop.f32.mrb[0].mxu0
        %v802 = vadd.f32 %v649, %v801
        %803 = vmatprep.mubr.f32.mxu0 0.0
        %804 = vmatmul.mubr.f32.gmra.mrb[0].mxu0 %v587
        %v805 = vpop.f32.mrb[0].mxu0
        %v806 = vadd.f32 %v654, %v805
        %v807 = vpop.f32.mrb[0].mxu0
        %v808 = vadd.f32 %v654, %v807
        %809 = vmatprep.mubr.f32.mxu0 0.0
        %810 = vmatmul.mubr.f32.gmra.mrb[0].mxu0 %v588
        %v811 = vpop.f32.mrb[0].mxu0
        %v812 = vadd.f32 %v659, %v811
        %v813 = vpop.f32.mrb[0].mxu0
        %v814 = vadd.f32 %v659, %v813
        %815 = vmatprep.mubr.f32.mxu0 0.0
        %816 = vmatmul.mubr.f32.gmra.mrb[0].mxu0 %v589
        %v817 = vpop.f32.mrb[0].mxu0
        %v818 = vadd.f32 %v664, %v817
        %v819 = vpop.f32.mrb[0].mxu0
        %v820 = vadd.f32 %v664, %v819
        %821 = vmatprep.mubr.f32.mxu0 0.0
        %822 = vmatmul.mubr.f32.gmra.mrb[0].mxu0 %v590
        %v823 = vpop.f32.mrb[0].mxu0
        %v824 = vadd.f32 %v669, %v823
        %v825 = vpop.f32.mrb[0].mxu0
        %v826 = vadd.f32 %v669, %v825
        %827 = vmatprep.mubr.f32.mxu0 0.0
        %828 = vmatmul.mubr.f32.gmra.mrb[0].mxu0 %v591
        %v829 = vpop.f32.mrb[0].mxu0
        %v830 = vadd.f32 %v674, %v829
        %v831 = vpop.f32.mrb[0].mxu0
        %v832 = vadd.f32 %v674, %v831
        %833 = vmatprep.mubr.f32.mxu0 0.0
        %834 = vmatmul.mubr.f32.gmra.mrb[0].mxu0 %v592
        %v835 = vpop.f32.mrb[0].mxu0
        %v836 = vadd.f32 %v679, %v835
        %v837 = vpop.f32.mrb[0].mxu0
        %v838 = vadd.f32 %v679, %v837
        %839 = vmatprep.mubr.f32.mxu0 0.0
        %840 = vmatmul.mubr.f32.gmra.mrb[0].mxu0 %v593
        %v841 = vpop.f32.mrb[0].mxu0
        %v842 = vadd.f32 %v684, %v841
        %v843 = vpop.f32.mrb[0].mxu0
        %v844 = vadd.f32 %v684, %v843
        %845 = vmatprep.mubr.f32.mxu0 0.0
        %846 = vmatmul.mubr.f32.gmra.mrb[0].mxu0 %v594
        %v847 = vpop.f32.mrb[0].mxu0
        %v848 = vadd.f32 %v689, %v847
        %v849 = vpop.f32.mrb[0].mxu0
        %v850 = vadd.f32 %v689, %v849
        %851 = vdwg.mxu0
        %v852 = vmax.f32 %v758, 0.0
        %v853 = vmax.f32 %v760, 0.0
        %v854 = vmax.f32 %v764, 0.0
        %v855 = vmax.f32 %v766, 0.0
        %v856 = vmax.f32 %v770, 0.0
        %v857 = vmax.f32 %v772, 0.0
        %v858 = vmax.f32 %v776, 0.0
        %v859 = vmax.f32 %v778, 0.0
        %v860 = vmax.f32 %v782, 0.0
        %v861 = vmax.f32 %v784, 0.0
        %v862 = vmax.f32 %v788, 0.0
        %v863 = vmax.f32 %v790, 0.0
        %v864 = vmax.f32 %v794, 0.0
        %v865 = vmax.f32 %v796, 0.0
        %v866 = vmax.f32 %v800, 0.0
        %v867 = vmax.f32 %v802, 0.0
        %v868 = vmax.f32 %v806, 0.0
        %v869 = vmax.f32 %v808, 0.0
        %v870 = vmax.f32 %v812, 0.0
        %v871 = vmax.f32 %v814, 0.0
        %v872 = vmax.f32 %v818, 0.0
        %v873 = vmax.f32 %v820, 0.0
        %v874 = vmax.f32 %v824, 0.0
        %v875 = vmax.f32 %v826, 0.0
        %v876 = vmax.f32 %v830, 0.0
        %v877 = vmax.f32 %v832, 0.0
        %v878 = vmax.f32 %v836, 0.0
        %v879 = vmax.f32 %v838, 0.0
        %v880 = vmax.f32 %v842, 0.0
        %v881 = vmax.f32 %v844, 0.0
        %v882 = vmax.f32 %v848, 0.0
        %v883 = vmax.f32 %v850, 0.0
        %v884 = vld [vmem:[%s5] sm:$0xff]
        %v885 = vld [vmem:[%s5 + $0x8] sm:$0xff]
        %v886 = vld [vmem:[%s5 + $0x10] sm:$0xff]
        %v887 = vld [vmem:[%s5 + $0x18] sm:$0xff]
        %v888 = vld [vmem:[%s5 + $0x20] sm:$0xff]
        %v889 = vld [vmem:[%s5 + $0x28] sm:$0xff]
        %v890 = vld [vmem:[%s5 + $0x30] sm:$0xff]
        %v891 = vld [vmem:[%s5 + $0x38] sm:$0xff]
        %v892 = vld [vmem:[%s5 + $0x40] sm:$0xff]
        %v893 = vld [vmem:[%s5 + $0x48] sm:$0xff]
        %v894 = vld [vmem:[%s5 + $0x50] sm:$0xff]
        %v895 = vld [vmem:[%s5 + $0x58] sm:$0xff]
        %v896 = vld [vmem:[%s5 + $0x60] sm:$0xff]
        %v897 = vld [vmem:[%s5 + $0x68] sm:$0xff]
        %v898 = vld [vmem:[%s5 + $0x70] sm:$0xff]
        %v899 = vld [vmem:[%s5 + $0x78] sm:$0xff]
        %901 = vset.pattern.permute.xlu0 0
        %902 = vperm.xlu0 %901, %v884
        %v903 = vpop.permute.xlu0 %902
        %906 = vset.pattern.permute.xlu0 0
        %907 = vperm.xlu0 %906, %v885
        %v908 = vpop.permute.xlu0 %907
        %911 = vset.pattern.permute.xlu0 0
        %912 = vperm.xlu0 %911, %v886
        %v913 = vpop.permute.xlu0 %912
        %916 = vset.pattern.permute.xlu0 0
        %917 = vperm.xlu0 %916, %v887
        %v918 = vpop.permute.xlu0 %917
        %921 = vset.pattern.permute.xlu0 0
        %922 = vperm.xlu0 %921, %v888
        %v923 = vpop.permute.xlu0 %922
        %926 = vset.pattern.permute.xlu0 0
        %927 = vperm.xlu0 %926, %v889
        %v928 = vpop.permute.xlu0 %927
        %931 = vset.pattern.permute.xlu0 0
        %932 = vperm.xlu0 %931, %v890
        %v933 = vpop.permute.xlu0 %932
        %936 = vset.pattern.permute.xlu0 0
        %937 = vperm.xlu0 %936, %v891
        %v938 = vpop.permute.xlu0 %937
        %941 = vset.pattern.permute.xlu0 0
        %942 = vperm.xlu0 %941, %v892
        %v943 = vpop.permute.xlu0 %942
        %946 = vset.pattern.permute.xlu0 0
        %947 = vperm.xlu0 %946, %v893
        %v948 = vpop.permute.xlu0 %947
        %951 = vset.pattern.permute.xlu0 0
        %952 = vperm.xlu0 %951, %v894
        %v953 = vpop.permute.xlu0 %952
        %956 = vset.pattern.permute.xlu0 0
        %957 = vperm.xlu0 %956, %v895
        %v958 = vpop.permute.xlu0 %957
        %961 = vset.pattern.permute.xlu0 0
        %962 = vperm.xlu0 %961, %v896
        %v963 = vpop.permute.xlu0 %962
        %966 = vset.pattern.permute.xlu0 0
        %967 = vperm.xlu0 %966, %v897
        %v968 = vpop.permute.xlu0 %967
        %971 = vset.pattern.permute.xlu0 0
        %972 = vperm.xlu0 %971, %v898
        %v973 = vpop.permute.xlu0 %972
        %976 = vset.pattern.permute.xlu0 0
        %977 = vperm.xlu0 %976, %v899
        %v978 = vpop.permute.xlu0 %977
        %v980 = vmul.f32 %v852, %v903
        %v981 = vmul.f32 %v853, %v903
        %v982 = vmul.f32 %v854, %v908
        %v983 = vmul.f32 %v855, %v908
        %v984 = vmul.f32 %v856, %v913
        %v985 = vmul.f32 %v857, %v913
        %v986 = vmul.f32 %v858, %v918
        %v987 = vmul.f32 %v859, %v918
        %v988 = vmul.f32 %v860, %v923
        %v989 = vmul.f32 %v861, %v923
        %v990 = vmul.f32 %v862, %v928
        %v991 = vmul.f32 %v863, %v928
        %v992 = vmul.f32 %v864, %v933
        %v993 = vmul.f32 %v865, %v933
        %v994 = vmul.f32 %v866, %v938
        %v995 = vmul.f32 %v867, %v938
        %v996 = vmul.f32 %v868, %v943
        %v997 = vmul.f32 %v869, %v943
        %v998 = vmul.f32 %v870, %v948
        %v999 = vmul.f32 %v871, %v948
        %v1000 = vmul.f32 %v872, %v953
        %v1001 = vmul.f32 %v873, %v953
        %v1002 = vmul.f32 %v874, %v958
        %v1003 = vmul.f32 %v875, %v958
        %v1004 = vmul.f32 %v876, %v963
        %v1005 = vmul.f32 %v877, %v963
        %v1006 = vmul.f32 %v878, %v968
        %v1007 = vmul.f32 %v879, %v968
        %v1008 = vmul.f32 %v880, %v973
        %v1009 = vmul.f32 %v881, %v973
        %v1010 = vmul.f32 %v882, %v978
        %v1011 = vmul.f32 %v883, %v978
        %v1012 = vadd.f32 %v980, %v982
        %v1013 = vadd.f32 %v1012, %v984
        %v1014 = vadd.f32 %v1013, %v986
        %v1015 = vadd.f32 %v1014, %v988
        %v1016 = vadd.f32 %v1015, %v990
        %v1017 = vadd.f32 %v1016, %v992
        %v1018 = vadd.f32 %v1017, %v994
        %v1019 = vadd.f32 %v1018, %v996
        %v1020 = vadd.f32 %v1019, %v998
        %v1021 = vadd.f32 %v1020, %v1000
        %v1022 = vadd.f32 %v1021, %v1002
        %v1023 = vadd.f32 %v1022, %v1004
        %v1024 = vadd.f32 %v1023, %v1006
        %v1025 = vadd.f32 %v1024, %v1008
        %v1026 = vadd.f32 %v1025, %v1010
        %v1027 = vrot.slane %v1026, 4
        %v1028 = vadd.f32 %v1026, %v1027
        %v1029 = vrot.slane %v1028, 2
        %v1030 = vadd.f32 %v1028, %v1029
        %v1031 = vrot.slane %v1030, 1
        %v1032 = vadd.f32 %v1030, %v1031
        %v1033 = vadd.f32 %v981, %v983
        %v1034 = vadd.f32 %v1033, %v985
        %v1035 = vadd.f32 %v1034, %v987
        %v1036 = vadd.f32 %v1035, %v989
        %v1037 = vadd.f32 %v1036, %v991
        %v1038 = vadd.f32 %v1037, %v993
        %v1039 = vadd.f32 %v1038, %v995
        %v1040 = vadd.f32 %v1039, %v997
        %v1041 = vadd.f32 %v1040, %v999
        %v1042 = vadd.f32 %v1041, %v1001
        %v1043 = vadd.f32 %v1042, %v1003
        %v1044 = vadd.f32 %v1043, %v1005
        %v1045 = vadd.f32 %v1044, %v1007
        %v1046 = vadd.f32 %v1045, %v1009
        %v1047 = vadd.f32 %v1046, %v1011
        %v1048 = vrot.slane %v1047, 4
        %v1049 = vadd.f32 %v1047, %v1048
        %v1050 = vrot.slane %v1049, 2
        %v1051 = vadd.f32 %v1049, %v1050
        %v1052 = vrot.slane %v1051, 1
        %v1053 = vadd.f32 %v1051, %v1052
        %v1054 = vld [vmem:[#allocation2] sm:$0x1]
        %1056 = vset.pattern.permute.xlu0 0
        %1057 = vperm.xlu0 %1056, %v1054
        %v1058 = vpop.permute.xlu0 %1057
        %v1060 = vlaneseq
        %v1061 = vshrl.u32 %v1060, 7
        %v1062 = vsub.s32 0, %v1061
        %v1063 = vrot.slane %v1058, %v1062
        %v1064 = vadd.f32 %v1032, %v1063
        %v1065 = vadd.f32 %v1053, %v1063
        %v1068 = vcombine.low %v1064, %v1065
        %v1070 = vunpack.c.l.s4 1966171168
        %v1071 = vunpack.c.0.s8 %v1070
        %v1072 = vlaneseq
        %v1073 = vshrl.u32 %v1072, 7
        %v1074 = vsub.s32 %v1071, %v1073
        %v1075 = vrot.slane %v1068, %v1074
        %v1077 = vunpack.c.l.s4 1966171168
        %v1078 = vunpack.c.0.s8 %v1077
        %v1079 = vlaneseq
        %v1080 = vshrl.u32 %v1079, 7
        %v1081 = vsub.s32 %v1078, %v1080
        %v1082 = vrot.slane %v1075, %v1081
        %v1084 = vlaneseq
        %vm1085 = vcmp.ge.s32.totalorder %v1084, 0
        %vm1086 = vcmp.lt.s32.totalorder %v1084, 256
        %vm1087 = vmand %vm1085, %vm1086
        %1088 = vst.msk [vmem:[%s272] sm:$0x3] %vm1087, %v1082
        %s1089 = sand.u32 %s183, 1
        %s1090 = scalar_lea.sflag [#allocation4], %s1089
        %s1091 = sand.u32 %s183, 1
        %s1092 = smul.addr %s1091, 2
        %s1093 = scalar_lea.vmem [#allocation3], %s1092
        // Predicated region
        $region49: #{tpu_custom_call.1} parent=47 // pred_check
          %p1094 = pneg %p193
        $region50: #{tpu_custom_call.1} parent=47 // pred_check_branch
          %1096 = sbr.rel (%p1094) target = $region52
        $region51: #{tpu_custom_call.1} parent=47 // pred_region
          %s1097 = smul.u32 2, %s23
          %s1099 = ssub.s32 32, 32
          %1100 = vsyncadd %s1090, %s1099
          %s1101 = smul.addr %s1097, 16
          %s1102 = scalar_lea.hbm %s7, %s1101
          %s1104 = sshll.u32 %s1093, 4
          %s1105 = int_to_ptr.vmem [resolvable:$true] %s1104
          %1107 = dma.vmem_to_hbm [thread:$0]  %s1105, 32, %s1102, %s1090
        $region52: #{tpu_custom_call.1} parent=47 // pred_fallthru
          _
      $region48: #{tpu_custom_call.1} parent=5 // pred_fallthru
        _
      %p1108 = scmp.le.s32.totalorder 2, %s18
      // Predicated region
      $region53: #{tpu_custom_call.1} parent=5 // pred_check
        %p1109 = pneg %p1108
      $region54: #{tpu_custom_call.1} parent=5 // pred_check_branch
        %1111 = sbr.rel (%p1109) target = $region56
      $region55: #{tpu_custom_call.1} parent=5 // pred_region
        %s1112 = ssub.s32 %s18, 2
        // Predicated region
        $region57: #{tpu_custom_call.1} parent=55 // pred_check
          %p1113 = pneg %p199
        $region58: #{tpu_custom_call.1} parent=55 // pred_check_branch
          %1115 = sbr.rel (%p1113) target = $region60
        $region59: #{tpu_custom_call.1} parent=55 // pred_region
          %s1116 = sand.u32 %s184, 1
          %s1117 = scalar_lea.sflag [#allocation4], %s1116
          %s1118 = sand.u32 %s184, 1
          %s1119 = smul.addr %s1118, 2
          %s1120 = scalar_lea.vmem [#allocation3], %s1119
          %1121 = dma.done %s1117, 32
        $region60: #{tpu_custom_call.1} parent=55 // pred_fallthru
          _
      $region56: #{tpu_custom_call.1} parent=5 // pred_fallthru
        _
    $region6: #{tpu_custom_call.1} parent=1 // loop_footer
      %s22 = sadd.s32 1, %s18
    $region7: #{tpu_custom_call.1} parent=1 // loop_footer_branch
      %17 = sbr.rel target = $region3
    $region8: #{tpu_custom_call.1} parent=1 // loop_exit
      _
    %1122 = vsyncpa [#allocation4], 1
    %s1123 = scalar_lea.sflag [#allocation4], 1
    %1124 = vsyncpa %s1123, 1

</llo_original>
